<compile_context>
chip_gen: v6e
topology: v6e:2x2x1
jax: 0.10.0
libtpu: 0.0.40
codegen_flags: <defaults>
</compile_context>

<pallas_src>
import functools
import math

import jax
import jax.numpy as jnp
from jax import lax
from jax.experimental import pallas as pl
from jax.experimental.pallas import tpu as pltpu

# ---------------- small Mistral-like config ----------------
BATCH = 2
SEQ = 8
HIDDEN = 32
NUM_HEADS = 4
NUM_KV_HEADS = 2
HEAD_DIM = HIDDEN // NUM_HEADS            # 8
KV_GROUPS = NUM_HEADS // NUM_KV_HEADS     # 2  (GQA repeat factor)
ROPE_THETA = 10000.0

# NT matmul: contract last axis of both operands (QK^T without k.T)
_NT_DIMS = (((1,), (1,)), ((), ()))


# ---------------- fused attention kernel ----------------
def _fused_attention_kernel(x_ref, wqkv_ref, wo_ref, cos_ref, sin_ref,
                            o_ref, acc_ref, *, num_heads, num_kv_heads, head_dim):
    kv_groups = num_heads // num_kv_heads
    q_out = num_heads * head_dim            # 32
    kv_out = num_kv_heads * head_dim        # 16
    inv_sqrt_d = 1.0 / math.sqrt(head_dim)
    seq = x_ref.shape[0]

    # ---- fused QKV (+ pre-rotated Q/K for RoPE) projection on the MXU ----
    # wqkv columns: [Wq | Wk | Wv | Wq@R | Wk@R], all bf16; f32 accumulate.
    x = x_ref[...].astype(jnp.bfloat16)                           # [S, H] bf16
    qkv = jnp.dot(x, wqkv_ref[...],
                  preferred_element_type=jnp.float32)             # [S, 112] f32

    q = qkv[:, :q_out]                                            # [S, 32]
    k = qkv[:, q_out:q_out + kv_out]                              # [S, 16]
    v = qkv[:, q_out + kv_out:q_out + 2 * kv_out]                 # [S, 16]
    q_rot = qkv[:, q_out + 2 * kv_out:2 * q_out + 2 * kv_out]     # [S, 32] = rotate_half(q)
    k_rot = qkv[:, 2 * q_out + 2 * kv_out:]                       # [S, 16] = rotate_half(k)

    # ---- RoPE: pure elementwise f32 (rotation already folded into weights) ----
    cos_q = cos_ref[...]                                          # [S, 32]
    sin_q = sin_ref[...]                                          # [S, 32]
    cos_k = cos_q[:, :kv_out]
    sin_k = sin_q[:, :kv_out]

    q = (q * cos_q + q_rot * sin_q) * inv_sqrt_d                  # fold 1/sqrt(D) into q
    k = k * cos_k + k_rot * sin_k

    # bf16 operands for the attention matmuls (accumulation stays f32)
    qb = q.astype(jnp.bfloat16)
    kb = k.astype(jnp.bfloat16)
    vb = v.astype(jnp.bfloat16)

    # ---- causal additive mask generated in-kernel (no HBM traffic) ----
    row = lax.broadcasted_iota(jnp.int32, (seq, seq), 0)
    col = lax.broadcasted_iota(jnp.int32, (seq, seq), 1)
    mask = jnp.where(col <= row, 0.0, -1e9).astype(jnp.float32)   # [S, S] f32

    # ---- per-head attention (statically unrolled; GQA via head // groups) ----
    for h in range(num_heads):
        g = h // kv_groups
        q_h = qb[:, h * head_dim:(h + 1) * head_dim]              # [S, D] bf16
        k_h = kb[:, g * head_dim:(g + 1) * head_dim]              # [S, D] bf16
        v_h = vb[:, g * head_dim:(g + 1) * head_dim]              # [S, D] bf16

        # QK^T via NT dimension numbers (no materialized transpose), f32 scores
        s = lax.dot_general(q_h, k_h, _NT_DIMS,
                            preferred_element_type=jnp.float32)   # [S, S] f32
        s = s + mask
        s = s - jnp.max(s, axis=-1, keepdims=True)
        p = jnp.exp(s)                                            # f32 softmax (v5e-safe)
        p = p * pl.reciprocal(jnp.sum(p, axis=-1, keepdims=True), approx=True)

        # PV with bf16 operands; stash this head's output in the accumulator
        attn_h = jnp.dot(p.astype(jnp.bfloat16), v_h,
                         preferred_element_type=jnp.float32)      # [S, D] f32
        acc_ref[:, h * head_dim:(h + 1) * head_dim] = attn_h

    # ---- single lane-dense o-proj matmul over all heads ----
    out = jnp.dot(acc_ref[...].astype(jnp.bfloat16), wo_ref[...],
                  preferred_element_type=jnp.float32)             # [S, H] f32
    o_ref[...] = out.astype(o_ref.dtype)


def mistral_attention(packed, hidden_states):
    """hidden_states: [B, S, H] f32.  Causal mask is generated in-kernel."""
    B, S, H = hidden_states.shape
    q_out = NUM_HEADS * HEAD_DIM
    kv_out = NUM_KV_HEADS * HEAD_DIM
    packed_width = q_out + 2 * kv_out + q_out + kv_out            # 112

    kernel = functools.partial(
        _fused_attention_kernel,
        num_heads=NUM_HEADS, num_kv_heads=NUM_KV_HEADS, head_dim=HEAD_DIM)

    return pl.pallas_call(
        kernel,
        out_shape=jax.ShapeDtypeStruct((B, S, H), hidden_states.dtype),
        grid=(B,),
        in_specs=[
            pl.BlockSpec((None, S, H), lambda b: (b, 0, 0)),          # hidden_states
            pl.BlockSpec((H, packed_width), lambda b: (0, 0)),        # wqkv (+rot), bf16
            pl.BlockSpec((q_out, H), lambda b: (0, 0)),               # wo, bf16
            pl.BlockSpec((S, q_out), lambda b: (0, 0)),               # cos (tiled per head)
            pl.BlockSpec((S, q_out), lambda b: (0, 0)),               # sin (tiled per head)
        ],
        out_specs=pl.BlockSpec((None, S, H), lambda b: (b, 0, 0)),
        scratch_shapes=[pltpu.VMEM((S, q_out), jnp.float32)],         # per-head attn accumulator
        compiler_params=pltpu.CompilerParams(
            dimension_semantics=("parallel",)),                       # batches across TCs (v7x)
    )(hidden_states, packed["wqkv"], packed["wo"],
      packed["cos_t"], packed["sin_t"])


# ---------------- one-time parameter / table packing (pure JAX, trace-time) ----------------
def make_rotary(seq_len, dim, theta):
    inv_freq = 1.0 / (theta ** (jnp.arange(0, dim, 2, dtype=jnp.float32) / dim))
    t = jnp.arange(seq_len, dtype=jnp.float32)
    freqs = jnp.outer(t, inv_freq)
    emb = jnp.concatenate([freqs, freqs], axis=-1)                 # [S, D]
    return jnp.cos(emb), jnp.sin(emb)


def _rotate_half_columns(w, n_heads, head_dim):
    """Columns of (w @ block_diag(R)) where R = [[0, I], [-I, 0]] per head.

    Exact signed column permutation, so x @ result == rotate_half(x @ w).
    """
    half = head_dim // 2
    blocks = []
    for h in range(n_heads):
        blk = w[:, h * head_dim:(h + 1) * head_dim]
        w1, w2 = blk[:, :half], blk[:, half:]
        blocks.append(jnp.concatenate([-w2, w1], axis=1))
    return jnp.concatenate(blocks, axis=1)


def pack_params(wq, wk, wv, wo, cos, sin):
    wq_rot = _rotate_half_columns(wq, NUM_HEADS, HEAD_DIM)
    wk_rot = _rotate_half_columns(wk, NUM_KV_HEADS, HEAD_DIM)
    return {
        # [H, 112]: [Wq | Wk | Wv | Wq@R | Wk@R] stored in bf16 (half the DMA)
        "wqkv": jnp.concatenate([wq, wk, wv, wq_rot, wk_rot], axis=1).astype(jnp.bfloat16),
        "wo": wo.astype(jnp.bfloat16),                                # [32, 32] bf16
        "cos_t": jnp.tile(cos, (1, NUM_HEADS)).astype(jnp.float32),   # [S, 32] f32
        "sin_t": jnp.tile(sin, (1, NUM_HEADS)).astype(jnp.float32),   # [S, 32] f32
    }


# ---------------- pure-JAX reference (mirrors the PyTorch module) ----------------
def reference_attention(wq, wk, wv, wo, hidden_states, attention_mask, cos, sin):
    B, S, H = hidden_states.shape
    q = hidden_states @ wq
    k = hidden_states @ wk
    v = hidden_states @ wv
    q = q.reshape(B, S, NUM_HEADS, HEAD_DIM).transpose(0, 2, 1, 3)
    k = k.reshape(B, S, NUM_KV_HEADS, HEAD_DIM).transpose(0, 2, 1, 3)
    v = v.reshape(B, S, NUM_KV_HEADS, HEAD_DIM).transpose(0, 2, 1, 3)

    def rotate_half(x):
        x1, x2 = jnp.split(x, 2, axis=-1)
        return jnp.concatenate([-x2, x1], axis=-1)

    cos_b = cos[None, None]
    sin_b = sin[None, None]
    q = q * cos_b + rotate_half(q) * sin_b
    k = k * cos_b + rotate_half(k) * sin_b
    k = jnp.repeat(k, KV_GROUPS, axis=1)
    v = jnp.repeat(v, KV_GROUPS, axis=1)
    scores = jnp.einsum("bhqd,bhkd->bhqk", q, k) / math.sqrt(HEAD_DIM)
    scores = scores + attention_mask
    p = jax.nn.softmax(scores, axis=-1)
    o = jnp.einsum("bhqk,bhkd->bhqd", p, v)
    o = o.transpose(0, 2, 1, 3).reshape(B, S, H)
    return o @ wo


if __name__ == "__main__":
    key = jax.random.PRNGKey(0)
    ks = jax.random.split(key, 5)
    scale = 0.05
    wq = scale * jax.random.normal(ks[0], (HIDDEN, NUM_HEADS * HEAD_DIM), jnp.float32)
    wk = scale * jax.random.normal(ks[1], (HIDDEN, NUM_KV_HEADS * HEAD_DIM), jnp.float32)
    wv = scale * jax.random.normal(ks[2], (HIDDEN, NUM_KV_HEADS * HEAD_DIM), jnp.float32)
    wo = scale * jax.random.normal(ks[3], (NUM_HEADS * HEAD_DIM, HIDDEN), jnp.float32)
    hidden_states = jax.random.normal(ks[4], (BATCH, SEQ, HIDDEN), jnp.float32)

    cos, sin = make_rotary(SEQ, HEAD_DIM, ROPE_THETA)
    packed = pack_params(wq, wk, wv, wo, cos, sin)

    out = mistral_attention(packed, hidden_states)
    out = jax.block_until_ready(out)

    assert out.shape == (BATCH, SEQ, HIDDEN), out.shape
    assert bool(jnp.all(jnp.isfinite(out)))

    # reference uses the same causal additive mask the kernel generates internally
    row = jnp.arange(SEQ)[:, None]
    col = jnp.arange(SEQ)[None, :]
    causal = jnp.where(col <= row, 0.0, -1e9).astype(jnp.float32)
    attention_mask = jnp.broadcast_to(causal[None, None], (BATCH, 1, SEQ, SEQ))
    ref = reference_attention(wq, wk, wv, wo, hidden_states, attention_mask, cos, sin)
    assert bool(jnp.allclose(out, ref, atol=2e-2)), float(jnp.max(jnp.abs(out - ref)))

    print("KERNEL_OK")
</pallas_src>

<mosaic_0001>
module attributes {stable_mosaic.version = 11 : i64} {
  func.func @_fused_attention_kernel(%arg0: i32, %arg1: memref<1x8x32xf32, #tpu.memory_space<vmem>>, %arg2: memref<32x112xbf16, #tpu.memory_space<vmem>>, %arg3: memref<32x32xbf16, #tpu.memory_space<vmem>>, %arg4: memref<8x32xf32, #tpu.memory_space<vmem>>, %arg5: memref<8x32xf32, #tpu.memory_space<vmem>>, %arg6: memref<1x8x32xf32, #tpu.memory_space<vmem>>, %arg7: memref<8x32xf32, #tpu.memory_space<vmem>>) attributes {dimension_semantics = [#tpu.dimension_semantics<parallel>], iteration_bounds = array<i64: 2>, scalar_prefetch = 0 : i64, scratch_operands = 1 : i64, tpu.core_type = #tpu.core_type<tc>, window_params = [{transform_indices = @transform_0, window_bounds = array<i64: 1, 8, 32>}, {pipeline_mode = #tpu.pipeline_mode<synchronous>, transform_indices = @transform_1, window_bounds = array<i64: 32, 112>}, {pipeline_mode = #tpu.pipeline_mode<synchronous>, transform_indices = @transform_2, window_bounds = array<i64: 32, 32>}, {pipeline_mode = #tpu.pipeline_mode<synchronous>, transform_indices = @transform_3, window_bounds = array<i64: 8, 32>}, {pipeline_mode = #tpu.pipeline_mode<synchronous>, transform_indices = @transform_4, window_bounds = array<i64: 8, 32>}, {transform_indices = @transform_5, window_bounds = array<i64: 1, 8, 32>}]} {
    %c0 = arith.constant 0 : index
    %c0_0 = arith.constant 0 : index
    %c0_1 = arith.constant 0 : index
    %0 = vector.load %arg1[%c0, %c0_0, %c0_1] : memref<1x8x32xf32, #tpu.memory_space<vmem>>, vector<1x8x32xf32>
    %1 = vector.shape_cast %0 : vector<1x8x32xf32> to vector<8x32xf32>
    %2 = arith.truncf %1 : vector<8x32xf32> to vector<8x32xbf16>
    %c0_2 = arith.constant 0 : index
    %c0_3 = arith.constant 0 : index
    %3 = vector.load %arg2[%c0_2, %c0_3] : memref<32x112xbf16, #tpu.memory_space<vmem>>, vector<32x112xbf16>
    %cst = arith.constant dense<0.000000e+00> : vector<8x112xf32>
    %4 = tpu.matmul %2, %3, %cst {dimension_numbers = #tpu.dot_dimension_numbers<[1], [0], [0], [1], [0, 0, 1, 1], [], []>} : vector<8x32xbf16>, vector<32x112xbf16>, vector<8x112xf32> -> vector<8x112xf32>
    %5 = vector.extract_strided_slice %4 {offsets = [0, 0], sizes = [8, 32], strides = [1, 1]} : vector<8x112xf32> to vector<8x32xf32>
    %6 = vector.extract_strided_slice %4 {offsets = [0, 32], sizes = [8, 16], strides = [1, 1]} : vector<8x112xf32> to vector<8x16xf32>
    %7 = vector.extract_strided_slice %4 {offsets = [0, 48], sizes = [8, 16], strides = [1, 1]} : vector<8x112xf32> to vector<8x16xf32>
    %8 = vector.extract_strided_slice %4 {offsets = [0, 64], sizes = [8, 32], strides = [1, 1]} : vector<8x112xf32> to vector<8x32xf32>
    %9 = vector.extract_strided_slice %4 {offsets = [0, 96], sizes = [8, 16], strides = [1, 1]} : vector<8x112xf32> to vector<8x16xf32>
    %c0_4 = arith.constant 0 : index
    %c0_5 = arith.constant 0 : index
    %10 = vector.load %arg4[%c0_4, %c0_5] : memref<8x32xf32, #tpu.memory_space<vmem>>, vector<8x32xf32>
    %c0_6 = arith.constant 0 : index
    %c0_7 = arith.constant 0 : index
    %11 = vector.load %arg5[%c0_6, %c0_7] : memref<8x32xf32, #tpu.memory_space<vmem>>, vector<8x32xf32>
    %12 = vector.extract_strided_slice %10 {offsets = [0, 0], sizes = [8, 16], strides = [1, 1]} : vector<8x32xf32> to vector<8x16xf32>
    %13 = vector.extract_strided_slice %11 {offsets = [0, 0], sizes = [8, 16], strides = [1, 1]} : vector<8x32xf32> to vector<8x16xf32>
    %14 = arith.mulf %5, %10 : vector<8x32xf32>
    %15 = arith.mulf %8, %11 : vector<8x32xf32>
    %16 = arith.addf %14, %15 : vector<8x32xf32>
    %cst_8 = arith.constant 0.353553385 : f32
    %17 = vector.broadcast %cst_8 : f32 to vector<8x32xf32>
    %18 = arith.mulf %16, %17 : vector<8x32xf32>
    %19 = arith.mulf %6, %12 : vector<8x16xf32>
    %20 = arith.mulf %9, %13 : vector<8x16xf32>
    %21 = arith.addf %19, %20 : vector<8x16xf32>
    %22 = arith.truncf %18 : vector<8x32xf32> to vector<8x32xbf16>
    %23 = arith.truncf %21 : vector<8x16xf32> to vector<8x16xbf16>
    %24 = arith.truncf %7 : vector<8x16xf32> to vector<8x16xbf16>
    %25 = tpu.iota {dimensions = array<i32: 0>} : vector<8x8xi32>
    %26 = tpu.iota {dimensions = array<i32: 1>} : vector<8x8xi32>
    %27 = arith.cmpi sle, %26, %25 : vector<8x8xi32>
    %cst_9 = arith.constant 0.000000e+00 : f32
    %cst_10 = arith.constant -1.000000e+09 : f32
    %28 = vector.broadcast %cst_9 : f32 to vector<8x8xf32>
    %29 = vector.broadcast %cst_10 : f32 to vector<8x8xf32>
    %30 = arith.select %27, %28, %29 : vector<8x8xi1>, vector<8x8xf32>
    %31 = vector.extract_strided_slice %22 {offsets = [0, 0], sizes = [8, 8], strides = [1, 1]} : vector<8x32xbf16> to vector<8x8xbf16>
    %32 = vector.extract_strided_slice %23 {offsets = [0, 0], sizes = [8, 8], strides = [1, 1]} : vector<8x16xbf16> to vector<8x8xbf16>
    %33 = vector.extract_strided_slice %24 {offsets = [0, 0], sizes = [8, 8], strides = [1, 1]} : vector<8x16xbf16> to vector<8x8xbf16>
    %cst_11 = arith.constant dense<0.000000e+00> : vector<8x8xf32>
    %34 = tpu.matmul %31, %32, %cst_11 {dimension_numbers = #tpu.dot_dimension_numbers<[1], [1], [0], [0], [0, 0, 1, 0], [], []>} : vector<8x8xbf16>, vector<8x8xbf16>, vector<8x8xf32> -> vector<8x8xf32>
    %35 = arith.addf %34, %30 : vector<8x8xf32>
    %cst_12 = arith.constant dense<0xFF800000> : vector<8xf32>
    %36 = vector.multi_reduction <maximumf>, %35, %cst_12 [1] : vector<8x8xf32> to vector<8xf32>
    %37 = vector.shape_cast %36 : vector<8xf32> to vector<8x1xf32>
    %38 = vector.broadcast %37 : vector<8x1xf32> to vector<8x8xf32>
    %39 = arith.subf %35, %38 : vector<8x8xf32>
    %40 = math.exp %39 : vector<8x8xf32>
    %cst_13 = arith.constant dense<0.000000e+00> : vector<8xf32>
    %41 = vector.multi_reduction <add>, %40, %cst_13 [1] : vector<8x8xf32> to vector<8xf32>
    %42 = vector.shape_cast %41 : vector<8xf32> to vector<8x1xf32>
    %43 = tpu.reciprocal %42 {approx = true} : vector<8x1xf32> -> vector<8x1xf32>
    %44 = vector.broadcast %43 : vector<8x1xf32> to vector<8x8xf32>
    %45 = arith.mulf %40, %44 : vector<8x8xf32>
    %46 = arith.truncf %45 : vector<8x8xf32> to vector<8x8xbf16>
    %cst_14 = arith.constant dense<0.000000e+00> : vector<8x8xf32>
    %47 = tpu.matmul %46, %33, %cst_14 {dimension_numbers = #tpu.dot_dimension_numbers<[1], [0], [0], [1], [0, 0, 1, 1], [], []>} : vector<8x8xbf16>, vector<8x8xbf16>, vector<8x8xf32> -> vector<8x8xf32>
    %c0_15 = arith.constant 0 : index
    %c0_16 = arith.constant 0 : index
    %48 = vector.load %arg7[%c0_15, %c0_16] : memref<8x32xf32, #tpu.memory_space<vmem>>, vector<8x8xf32>
    tpu.vector_store %arg7[%c0_15, %c0_16], %47 {strides = array<i32>} : memref<8x32xf32, #tpu.memory_space<vmem>>, vector<8x8xf32>,
    %49 = vector.extract_strided_slice %22 {offsets = [0, 8], sizes = [8, 8], strides = [1, 1]} : vector<8x32xbf16> to vector<8x8xbf16>
    %50 = vector.extract_strided_slice %23 {offsets = [0, 0], sizes = [8, 8], strides = [1, 1]} : vector<8x16xbf16> to vector<8x8xbf16>
    %51 = vector.extract_strided_slice %24 {offsets = [0, 0], sizes = [8, 8], strides = [1, 1]} : vector<8x16xbf16> to vector<8x8xbf16>
    %cst_17 = arith.constant dense<0.000000e+00> : vector<8x8xf32>
    %52 = tpu.matmul %49, %50, %cst_17 {dimension_numbers = #tpu.dot_dimension_numbers<[1], [1], [0], [0], [0, 0, 1, 0], [], []>} : vector<8x8xbf16>, vector<8x8xbf16>, vector<8x8xf32> -> vector<8x8xf32>
    %53 = arith.addf %52, %30 : vector<8x8xf32>
    %cst_18 = arith.constant dense<0xFF800000> : vector<8xf32>
    %54 = vector.multi_reduction <maximumf>, %53, %cst_18 [1] : vector<8x8xf32> to vector<8xf32>
    %55 = vector.shape_cast %54 : vector<8xf32> to vector<8x1xf32>
    %56 = vector.broadcast %55 : vector<8x1xf32> to vector<8x8xf32>
    %57 = arith.subf %53, %56 : vector<8x8xf32>
    %58 = math.exp %57 : vector<8x8xf32>
    %cst_19 = arith.constant dense<0.000000e+00> : vector<8xf32>
    %59 = vector.multi_reduction <add>, %58, %cst_19 [1] : vector<8x8xf32> to vector<8xf32>
    %60 = vector.shape_cast %59 : vector<8xf32> to vector<8x1xf32>
    %61 = tpu.reciprocal %60 {approx = true} : vector<8x1xf32> -> vector<8x1xf32>
    %62 = vector.broadcast %61 : vector<8x1xf32> to vector<8x8xf32>
    %63 = arith.mulf %58, %62 : vector<8x8xf32>
    %64 = arith.truncf %63 : vector<8x8xf32> to vector<8x8xbf16>
    %cst_20 = arith.constant dense<0.000000e+00> : vector<8x8xf32>
    %65 = tpu.matmul %64, %51, %cst_20 {dimension_numbers = #tpu.dot_dimension_numbers<[1], [0], [0], [1], [0, 0, 1, 1], [], []>} : vector<8x8xbf16>, vector<8x8xbf16>, vector<8x8xf32> -> vector<8x8xf32>
    %c0_21 = arith.constant 0 : index
    %c8 = arith.constant 8 : index
    %66 = vector.load %arg7[%c0_21, %c8] : memref<8x32xf32, #tpu.memory_space<vmem>>, vector<8x8xf32>
    tpu.vector_store %arg7[%c0_21, %c8], %65 {strides = array<i32>} : memref<8x32xf32, #tpu.memory_space<vmem>>, vector<8x8xf32>,
    %67 = vector.extract_strided_slice %22 {offsets = [0, 16], sizes = [8, 8], strides = [1, 1]} : vector<8x32xbf16> to vector<8x8xbf16>
    %68 = vector.extract_strided_slice %23 {offsets = [0, 8], sizes = [8, 8], strides = [1, 1]} : vector<8x16xbf16> to vector<8x8xbf16>
    %69 = vector.extract_strided_slice %24 {offsets = [0, 8], sizes = [8, 8], strides = [1, 1]} : vector<8x16xbf16> to vector<8x8xbf16>
    %cst_22 = arith.constant dense<0.000000e+00> : vector<8x8xf32>
    %70 = tpu.matmul %67, %68, %cst_22 {dimension_numbers = #tpu.dot_dimension_numbers<[1], [1], [0], [0], [0, 0, 1, 0], [], []>} : vector<8x8xbf16>, vector<8x8xbf16>, vector<8x8xf32> -> vector<8x8xf32>
    %71 = arith.addf %70, %30 : vector<8x8xf32>
    %cst_23 = arith.constant dense<0xFF800000> : vector<8xf32>
    %72 = vector.multi_reduction <maximumf>, %71, %cst_23 [1] : vector<8x8xf32> to vector<8xf32>
    %73 = vector.shape_cast %72 : vector<8xf32> to vector<8x1xf32>
    %74 = vector.broadcast %73 : vector<8x1xf32> to vector<8x8xf32>
    %75 = arith.subf %71, %74 : vector<8x8xf32>
    %76 = math.exp %75 : vector<8x8xf32>
    %cst_24 = arith.constant dense<0.000000e+00> : vector<8xf32>
    %77 = vector.multi_reduction <add>, %76, %cst_24 [1] : vector<8x8xf32> to vector<8xf32>
    %78 = vector.shape_cast %77 : vector<8xf32> to vector<8x1xf32>
    %79 = tpu.reciprocal %78 {approx = true} : vector<8x1xf32> -> vector<8x1xf32>
    %80 = vector.broadcast %79 : vector<8x1xf32> to vector<8x8xf32>
    %81 = arith.mulf %76, %80 : vector<8x8xf32>
    %82 = arith.truncf %81 : vector<8x8xf32> to vector<8x8xbf16>
    %cst_25 = arith.constant dense<0.000000e+00> : vector<8x8xf32>
    %83 = tpu.matmul %82, %69, %cst_25 {dimension_numbers = #tpu.dot_dimension_numbers<[1], [0], [0], [1], [0, 0, 1, 1], [], []>} : vector<8x8xbf16>, vector<8x8xbf16>, vector<8x8xf32> -> vector<8x8xf32>
    %c0_26 = arith.constant 0 : index
    %c16 = arith.constant 16 : index
    %84 = vector.load %arg7[%c0_26, %c16] : memref<8x32xf32, #tpu.memory_space<vmem>>, vector<8x8xf32>
    tpu.vector_store %arg7[%c0_26, %c16], %83 {strides = array<i32>} : memref<8x32xf32, #tpu.memory_space<vmem>>, vector<8x8xf32>,
    %85 = vector.extract_strided_slice %22 {offsets = [0, 24], sizes = [8, 8], strides = [1, 1]} : vector<8x32xbf16> to vector<8x8xbf16>
    %86 = vector.extract_strided_slice %23 {offsets = [0, 8], sizes = [8, 8], strides = [1, 1]} : vector<8x16xbf16> to vector<8x8xbf16>
    %87 = vector.extract_strided_slice %24 {offsets = [0, 8], sizes = [8, 8], strides = [1, 1]} : vector<8x16xbf16> to vector<8x8xbf16>
    %cst_27 = arith.constant dense<0.000000e+00> : vector<8x8xf32>
    %88 = tpu.matmul %85, %86, %cst_27 {dimension_numbers = #tpu.dot_dimension_numbers<[1], [1], [0], [0], [0, 0, 1, 0], [], []>} : vector<8x8xbf16>, vector<8x8xbf16>, vector<8x8xf32> -> vector<8x8xf32>
    %89 = arith.addf %88, %30 : vector<8x8xf32>
    %cst_28 = arith.constant dense<0xFF800000> : vector<8xf32>
    %90 = vector.multi_reduction <maximumf>, %89, %cst_28 [1] : vector<8x8xf32> to vector<8xf32>
    %91 = vector.shape_cast %90 : vector<8xf32> to vector<8x1xf32>
    %92 = vector.broadcast %91 : vector<8x1xf32> to vector<8x8xf32>
    %93 = arith.subf %89, %92 : vector<8x8xf32>
    %94 = math.exp %93 : vector<8x8xf32>
    %cst_29 = arith.constant dense<0.000000e+00> : vector<8xf32>
    %95 = vector.multi_reduction <add>, %94, %cst_29 [1] : vector<8x8xf32> to vector<8xf32>
    %96 = vector.shape_cast %95 : vector<8xf32> to vector<8x1xf32>
    %97 = tpu.reciprocal %96 {approx = true} : vector<8x1xf32> -> vector<8x1xf32>
    %98 = vector.broadcast %97 : vector<8x1xf32> to vector<8x8xf32>
    %99 = arith.mulf %94, %98 : vector<8x8xf32>
    %100 = arith.truncf %99 : vector<8x8xf32> to vector<8x8xbf16>
    %cst_30 = arith.constant dense<0.000000e+00> : vector<8x8xf32>
    %101 = tpu.matmul %100, %87, %cst_30 {dimension_numbers = #tpu.dot_dimension_numbers<[1], [0], [0], [1], [0, 0, 1, 1], [], []>} : vector<8x8xbf16>, vector<8x8xbf16>, vector<8x8xf32> -> vector<8x8xf32>
    %c0_31 = arith.constant 0 : index
    %c24 = arith.constant 24 : index
    %102 = vector.load %arg7[%c0_31, %c24] : memref<8x32xf32, #tpu.memory_space<vmem>>, vector<8x8xf32>
    tpu.vector_store %arg7[%c0_31, %c24], %101 {strides = array<i32>} : memref<8x32xf32, #tpu.memory_space<vmem>>, vector<8x8xf32>,
    %c0_32 = arith.constant 0 : index
    %c0_33 = arith.constant 0 : index
    %103 = vector.load %arg7[%c0_32, %c0_33] : memref<8x32xf32, #tpu.memory_space<vmem>>, vector<8x32xf32>
    %104 = arith.truncf %103 : vector<8x32xf32> to vector<8x32xbf16>
    %c0_34 = arith.constant 0 : index
    %c0_35 = arith.constant 0 : index
    %105 = vector.load %arg3[%c0_34, %c0_35] : memref<32x32xbf16, #tpu.memory_space<vmem>>, vector<32x32xbf16>
    %cst_36 = arith.constant dense<0.000000e+00> : vector<8x32xf32>
    %106 = tpu.matmul %104, %105, %cst_36 {dimension_numbers = #tpu.dot_dimension_numbers<[1], [0], [0], [1], [0, 0, 1, 1], [], []>} : vector<8x32xbf16>, vector<32x32xbf16>, vector<8x32xf32> -> vector<8x32xf32>
    %c0_37 = arith.constant 0 : index
    %c0_38 = arith.constant 0 : index
    %c0_39 = arith.constant 0 : index
    %107 = vector.load %arg6[%c0_37, %c0_38, %c0_39] : memref<1x8x32xf32, #tpu.memory_space<vmem>>, vector<1x8x32xf32>
    %108 = vector.shape_cast %107 : vector<1x8x32xf32> to vector<8x32xf32>
    %109 = vector.shape_cast %106 : vector<8x32xf32> to vector<1x8x32xf32>
    tpu.vector_store %arg6[%c0_37, %c0_38, %c0_39], %109 {strides = array<i32>} : memref<1x8x32xf32, #tpu.memory_space<vmem>>, vector<1x8x32xf32>,
    return
  }
  func.func @transform_0(%arg0: i32) -> (i32, i32, i32) {
    %c0_i32 = arith.constant 0 : i32
    %c0_i32_0 = arith.constant 0 : i32
    %c0_i32_1 = arith.constant 0 : i32
    return %arg0, %c0_i32, %c0_i32_0 : i32, i32, i32
  }
  func.func @transform_1(%arg0: i32) -> (i32, i32) {
    %c0_i32 = arith.constant 0 : i32
    %c0_i32_0 = arith.constant 0 : i32
    %c0_i32_1 = arith.constant 0 : i32
    return %c0_i32, %c0_i32_0 : i32, i32
  }
  func.func @transform_2(%arg0: i32) -> (i32, i32) {
    %c0_i32 = arith.constant 0 : i32
    %c0_i32_0 = arith.constant 0 : i32
    %c0_i32_1 = arith.constant 0 : i32
    return %c0_i32, %c0_i32_0 : i32, i32
  }
  func.func @transform_3(%arg0: i32) -> (i32, i32) {
    %c0_i32 = arith.constant 0 : i32
    %c0_i32_0 = arith.constant 0 : i32
    %c0_i32_1 = arith.constant 0 : i32
    return %c0_i32, %c0_i32_0 : i32, i32
  }
  func.func @transform_4(%arg0: i32) -> (i32, i32) {
    %c0_i32 = arith.constant 0 : i32
    %c0_i32_0 = arith.constant 0 : i32
    %c0_i32_1 = arith.constant 0 : i32
    return %c0_i32, %c0_i32_0 : i32, i32
  }
  func.func @transform_5(%arg0: i32) -> (i32, i32, i32) {
    %c0_i32 = arith.constant 0 : i32
    %c0_i32_0 = arith.constant 0 : i32
    %c0_i32_1 = arith.constant 0 : i32
    return %arg0, %c0_i32, %c0_i32_0 : i32, i32, i32
  }
}

</mosaic_0001>

<llo_original>
// kernel: tpu_custom_call.1
$region0: #{tpu_custom_call.1}
  #allocation0 [shape = 'u32[]', space=smem, size = 0x4, offset = 0x4, fixed_abs, tag = 'smem constant byte address 0x4 - core index']
  #allocation1 [shape = 'u32[144,128]{1,0:T(1,128)}', space=vmem, size = 0x12000, scoped, tag = 'internal scratch']
  #allocation2 [shape = 'f32[8,32]{1,0:T(8,128)}', space=vmem, size = 0x1000, scoped, tag = 'scratch operand']
  %s0 = inlined_call_operand.hbm [shape: f32[2,8,32], index: 0, kind: input, shape index: {}]
  %s1 = inlined_call_operand.hbm [shape: bf16[32,112], index: 1, kind: input, shape index: {}]
  %s2 = inlined_call_operand.hbm [shape: bf16[32,32], index: 2, kind: input, shape index: {}]
  %s3 = inlined_call_operand.hbm [shape: f32[8,32], index: 3, kind: input, shape index: {}]
  %s4 = inlined_call_operand.hbm [shape: f32[8,32], index: 4, kind: input, shape index: {}]
  %s5 = inlined_call_operand.hbm [shape: f32[2,8,32], index: 5, kind: output, shape index: {}]
  %s6 = sld [smem:[#allocation0]]
  $region73: #{tpu_custom_call.1} parent=0
    _
  %s8 = ssub.s32 1, %s6
  %s9 = scalar_select 0, %s8, %s6
  $region1: #{tpu_custom_call.1} parent=0
    #allocation3 [shape = 'u8[8192]{0}', space=vmem, size = 0x2000, scoped, tag = 'input window, operand 0']
    #allocation4 [shape = 's32[2]{0}', space=sflag, size = 0x8, scoped, tag = 'scoped memory for tpu_custom_call.1']
    #allocation5 [shape = 's32[2]{0}', space=sflag, size = 0x8, scoped, tag = 'scoped memory for tpu_custom_call.1']
    #allocation6 [shape = 'u8[8192]{0}', space=vmem, size = 0x2000, scoped, tag = 'input window, operand 1, single buffered']
    #allocation7 [shape = 's32[1]{0}', space=sflag, size = 0x4, scoped, tag = 'scoped memory for tpu_custom_call.1']
    #allocation8 [shape = 'u8[8192]{0}', space=vmem, size = 0x2000, scoped, tag = 'input window, operand 2, single buffered']
    #allocation9 [shape = 'u8[4096]{0}', space=vmem, size = 0x1000, scoped, tag = 'input window, operand 3, single buffered']
    #allocation10 [shape = 's32[1]{0}', space=sflag, size = 0x4, scoped, tag = 'scoped memory for tpu_custom_call.1']
    #allocation11 [shape = 'u8[4096]{0}', space=vmem, size = 0x1000, scoped, tag = 'input window, operand 4, single buffered']
    #allocation12 [shape = 'u8[8192]{0}', space=vmem, size = 0x2000, scoped, tag = 'output window, operand 0']
    %10 = vsyncpa [#allocation4], 0
    %s11 = scalar_lea.sflag [#allocation4], 1
    %12 = vsyncpa %s11, 0
    %13 = vsyncpa [#allocation7], 0
    %14 = vsyncpa [#allocation10], 0
    %15 = vsyncpa [#allocation5], 0
    %s16 = scalar_lea.sflag [#allocation5], 1
    %17 = vsyncpa %s16, 0
    loop: start=0, step=1, limit=4
    $region2: #{tpu_custom_call.1} parent=1 // loop_pre_header
      _
    $region3: #{tpu_custom_call.1} parent=1 // loop_header
      %s19 = sphi 0, %s23
      %p20 = scmp.ge.s32.totalorder %s19, 4
      %s29 = sphi 0, %s31
      %s32 = sphi 0, %s29
      %s33 = sphi 0, %s32
      %s49 = sphi 0, %s33
      %s53 = sphi 0, %s53
      %s55 = sphi 0, %s53
      %s56 = sphi 0, %s55
      %s70 = sphi 0, %s56
      %s74 = sphi 0, %s74
      %s76 = sphi 0, %s74
      %s77 = sphi 0, %s76
      %s91 = sphi 0, %s77
      %s95 = sphi 0, %s95
      %s97 = sphi 0, %s95
      %s98 = sphi 0, %s97
      %s112 = sphi 0, %s98
      %s116 = sphi 0, %s116
      %s118 = sphi 0, %s116
      %s119 = sphi 0, %s118
      %s133 = sphi 0, %s119
      %s139 = sphi 0, %s141
      %s142 = sphi 0, %s139
      %s143 = sphi 0, %s142
      %s159 = sphi 0, %s143
    $region4: #{tpu_custom_call.1} parent=1 // loop_header_branch
      %22 = sbr.rel (%p20) target = $region8
    $region5: #{tpu_custom_call.1} parent=1 // loop_body
      %s24 = ssub.s32 %s19, 1
      %s25 = ssub.s32 %s19, 2
      %s26 = sadd.s32 %s19, 1
      %s27 = ssub.s32 %s19, %s26
      %p28 = scmp.eq.s32.totalorder %s27, 0
      %s30 = sadd.s32 %s29, 1
      %s31 = scalar_select %p28, %s29, %s30
      %p34 = pneg %p28
      %p35 = scmp.eq.s32.totalorder %s19, 1
      %p36 = por %p34, %p35
      %p37 = scmp.ne.s32.totalorder %s29, %s32
      %p38 = scmp.eq.s32.totalorder %s19, 0
      %p39 = por %p37, %p38
      %p40 = scmp.ne.s32.totalorder %s29, %s32
      %p41 = scmp.eq.s32.totalorder %s24, 1
      %p42 = por %p40, %p41
      %p43 = scmp.ne.s32.totalorder %s32, %s33
      %p44 = scmp.eq.s32.totalorder %s24, 0
      %p45 = por %p43, %p44
      %p46 = scmp.ne.s32.totalorder %s32, %s33
      %p47 = scmp.eq.s32.totalorder %s25, 1
      %p48 = por %p46, %p47
      %p50 = scmp.ne.s32.totalorder %s33, %s49
      %p51 = scmp.eq.s32.totalorder %s25, 0
      %p52 = por %p50, %p51
      %s54 = sadd.s32 %s53, 1
      %p57 = scmp.eq.s32.totalorder %s19, 1
      %p58 = scmp.ne.s32.totalorder %s53, %s55
      %p59 = scmp.eq.s32.totalorder %s19, 0
      %p60 = por %p58, %p59
      %p61 = scmp.ne.s32.totalorder %s53, %s55
      %p62 = scmp.eq.s32.totalorder %s24, 1
      %p63 = por %p61, %p62
      %p64 = scmp.ne.s32.totalorder %s55, %s56
      %p65 = scmp.eq.s32.totalorder %s24, 0
      %p66 = por %p64, %p65
      %p67 = scmp.ne.s32.totalorder %s55, %s56
      %p68 = scmp.eq.s32.totalorder %s25, 1
      %p69 = por %p67, %p68
      %p71 = scmp.ne.s32.totalorder %s56, %s70
      %p72 = scmp.eq.s32.totalorder %s25, 0
      %p73 = por %p71, %p72
      %s75 = sadd.s32 %s74, 1
      %p78 = scmp.eq.s32.totalorder %s19, 1
      %p79 = scmp.ne.s32.totalorder %s74, %s76
      %p80 = scmp.eq.s32.totalorder %s19, 0
      %p81 = por %p79, %p80
      %p82 = scmp.ne.s32.totalorder %s74, %s76
      %p83 = scmp.eq.s32.totalorder %s24, 1
      %p84 = por %p82, %p83
      %p85 = scmp.ne.s32.totalorder %s76, %s77
      %p86 = scmp.eq.s32.totalorder %s24, 0
      %p87 = por %p85, %p86
      %p88 = scmp.ne.s32.totalorder %s76, %s77
      %p89 = scmp.eq.s32.totalorder %s25, 1
      %p90 = por %p88, %p89
      %p92 = scmp.ne.s32.totalorder %s77, %s91
      %p93 = scmp.eq.s32.totalorder %s25, 0
      %p94 = por %p92, %p93
      %s96 = sadd.s32 %s95, 1
      %p99 = scmp.eq.s32.totalorder %s19, 1
      %p100 = scmp.ne.s32.totalorder %s95, %s97
      %p101 = scmp.eq.s32.totalorder %s19, 0
      %p102 = por %p100, %p101
      %p103 = scmp.ne.s32.totalorder %s95, %s97
      %p104 = scmp.eq.s32.totalorder %s24, 1
      %p105 = por %p103, %p104
      %p106 = scmp.ne.s32.totalorder %s97, %s98
      %p107 = scmp.eq.s32.totalorder %s24, 0
      %p108 = por %p106, %p107
      %p109 = scmp.ne.s32.totalorder %s97, %s98
      %p110 = scmp.eq.s32.totalorder %s25, 1
      %p111 = por %p109, %p110
      %p113 = scmp.ne.s32.totalorder %s98, %s112
      %p114 = scmp.eq.s32.totalorder %s25, 0
      %p115 = por %p113, %p114
      %s117 = sadd.s32 %s116, 1
      %p120 = scmp.eq.s32.totalorder %s19, 1
      %p121 = scmp.ne.s32.totalorder %s116, %s118
      %p122 = scmp.eq.s32.totalorder %s19, 0
      %p123 = por %p121, %p122
      %p124 = scmp.ne.s32.totalorder %s116, %s118
      %p125 = scmp.eq.s32.totalorder %s24, 1
      %p126 = por %p124, %p125
      %p127 = scmp.ne.s32.totalorder %s118, %s119
      %p128 = scmp.eq.s32.totalorder %s24, 0
      %p129 = por %p127, %p128
      %p130 = scmp.ne.s32.totalorder %s118, %s119
      %p131 = scmp.eq.s32.totalorder %s25, 1
      %p132 = por %p130, %p131
      %p134 = scmp.ne.s32.totalorder %s119, %s133
      %p135 = scmp.eq.s32.totalorder %s25, 0
      %p136 = por %p134, %p135
      %s137 = ssub.s32 %s19, %s26
      %p138 = scmp.eq.s32.totalorder %s137, 0
      %s140 = sadd.s32 %s139, 1
      %s141 = scalar_select %p138, %s139, %s140
      %p144 = pneg %p138
      %p145 = scmp.eq.s32.totalorder %s19, 1
      %p146 = por %p144, %p145
      %p147 = scmp.ne.s32.totalorder %s139, %s142
      %p148 = scmp.eq.s32.totalorder %s19, 0
      %p149 = por %p147, %p148
      %p150 = scmp.ne.s32.totalorder %s139, %s142
      %p151 = scmp.eq.s32.totalorder %s24, 1
      %p152 = por %p150, %p151
      %p153 = scmp.ne.s32.totalorder %s142, %s143
      %p154 = scmp.eq.s32.totalorder %s24, 0
      %p155 = por %p153, %p154
      %p156 = scmp.ne.s32.totalorder %s142, %s143
      %p157 = scmp.eq.s32.totalorder %s25, 1
      %p158 = por %p156, %p157
      %p160 = scmp.ne.s32.totalorder %s143, %s159
      %p161 = scmp.eq.s32.totalorder %s25, 0
      %p162 = por %p160, %p161
      %p163 = scmp.le.s32.totalorder 1, %s19
      %p164 = scmp.lt.s32.totalorder %s19, 3
      %p165 = pnand %p163, %p164
      %p166 = pneg %p165
      // Predicated region
      $region9: #{tpu_custom_call.1} parent=5 // pred_check
        _
      $region10: #{tpu_custom_call.1} parent=5 // pred_check_branch
        %168 = sbr.rel (%p165) target = $region12
      $region11: #{tpu_custom_call.1} parent=5 // pred_region
        %s169 = ssub.s32 %s19, 1
        // Predicated region
        $region13: #{tpu_custom_call.1} parent=11 // pred_check
          %p170 = pneg %p66
        $region14: #{tpu_custom_call.1} parent=11 // pred_check_branch
          %172 = sbr.rel (%p170) target = $region16
        $region15: #{tpu_custom_call.1} parent=11 // pred_region
          %s174 = ssub.s32 256, 256
          %175 = vsyncadd [#allocation7], %s174
          %s176 = sshll.u32 [#allocation6], 4
          %s177 = int_to_ptr.vmem [resolvable:$true] %s176
          %182 = dma.hbm_to_vmem [thread:$0]  %s1, 256, %s177, [#allocation7], 64, 64, 4
        $region16: #{tpu_custom_call.1} parent=11 // pred_fallthru
          _
        // Predicated region
        $region17: #{tpu_custom_call.1} parent=11 // pred_check
          %p183 = pneg %p87
        $region18: #{tpu_custom_call.1} parent=11 // pred_check_branch
          %185 = sbr.rel (%p183) target = $region20
        $region19: #{tpu_custom_call.1} parent=11 // pred_region
          %s187 = ssub.s32 256, 256
          %188 = vsyncadd [#allocation7], %s187
          %s189 = sshll.u32 [#allocation8], 4
          %s190 = int_to_ptr.vmem [resolvable:$true] %s189
          %195 = dma.hbm_to_vmem [thread:$0]  %s2, 256, %s190, [#allocation7], 64, 64, 4
        $region20: #{tpu_custom_call.1} parent=11 // pred_fallthru
          _
        // Predicated region
        $region21: #{tpu_custom_call.1} parent=11 // pred_check
          %p196 = pneg %p108
        $region22: #{tpu_custom_call.1} parent=11 // pred_check_branch
          %198 = sbr.rel (%p196) target = $region24
        $region23: #{tpu_custom_call.1} parent=11 // pred_region
          %s200 = ssub.s32 128, 128
          %201 = vsyncadd [#allocation10], %s200
          %s203 = sshll.u32 [#allocation9], 4
          %s204 = int_to_ptr.vmem [resolvable:$true] %s203
          %206 = dma.hbm_to_vmem [thread:$0]  %s3, 128, %s204, [#allocation10]
        $region24: #{tpu_custom_call.1} parent=11 // pred_fallthru
          _
        // Predicated region
        $region25: #{tpu_custom_call.1} parent=11 // pred_check
          %p207 = pneg %p129
        $region26: #{tpu_custom_call.1} parent=11 // pred_check_branch
          %209 = sbr.rel (%p207) target = $region28
        $region27: #{tpu_custom_call.1} parent=11 // pred_region
          %s211 = ssub.s32 128, 128
          %212 = vsyncadd [#allocation10], %s211
          %s214 = sshll.u32 [#allocation11], 4
          %s215 = int_to_ptr.vmem [resolvable:$true] %s214
          %217 = dma.hbm_to_vmem [thread:$0]  %s4, 128, %s215, [#allocation10]
        $region28: #{tpu_custom_call.1} parent=11 // pred_fallthru
          _
      $region12: #{tpu_custom_call.1} parent=5 // pred_fallthru
        _
      %p218 = scmp.lt.s32.totalorder %s19, 2
      // Predicated region
      $region29: #{tpu_custom_call.1} parent=5 // pred_check
        %p219 = pneg %p218
      $region30: #{tpu_custom_call.1} parent=5 // pred_check_branch
        %221 = sbr.rel (%p219) target = $region32
      $region31: #{tpu_custom_call.1} parent=5 // pred_region
        // Predicated region
        $region33: #{tpu_custom_call.1} parent=31 // pred_check
          %p222 = pneg %p39
        $region34: #{tpu_custom_call.1} parent=31 // pred_check_branch
          %224 = sbr.rel (%p222) target = $region36
        $region35: #{tpu_custom_call.1} parent=31 // pred_region
          %s225 = sand.u32 %s29, 1
          %s226 = scalar_lea.sflag [#allocation4], %s225
          %s227 = sand.u32 %s29, 1
          %s228 = smul.addr %s227, 8
          %s229 = scalar_lea.vmem [#allocation3], %s228
          %s231 = ssub.s32 128, 128
          %232 = vsyncadd %s226, %s231
          %s233 = smul.addr %s19, 128
          %s234 = scalar_lea.hbm %s0, %s233
          %s236 = sshll.u32 %s229, 4
          %s237 = int_to_ptr.vmem [resolvable:$true] %s236
          %239 = dma.hbm_to_vmem [thread:$0]  %s234, 128, %s237, %s226
        $region36: #{tpu_custom_call.1} parent=31 // pred_fallthru
          _
      $region32: #{tpu_custom_call.1} parent=5 // pred_fallthru
        _
      %p240 = scmp.le.s32.totalorder 1, %s19
      %p241 = scmp.lt.s32.totalorder %s19, 3
      %p242 = pnand %p240, %p241
      %p243 = pneg %p242
      // Predicated region
      $region37: #{tpu_custom_call.1} parent=5 // pred_check
        _
      $region38: #{tpu_custom_call.1} parent=5 // pred_check_branch
        %245 = sbr.rel (%p242) target = $region40
      $region39: #{tpu_custom_call.1} parent=5 // pred_region
        %s246 = ssub.s32 %s19, 1
        %s247 = sand.u32 %s32, 1
        %s248 = scalar_lea.sflag [#allocation4], %s247
        %s249 = sand.u32 %s32, 1
        %s250 = smul.addr %s249, 8
        %s251 = scalar_lea.vmem [#allocation3], %s250
        // Predicated region
        $region41: #{tpu_custom_call.1} parent=39 // pred_check
          %p252 = pneg %p45
        $region42: #{tpu_custom_call.1} parent=39 // pred_check_branch
          %254 = sbr.rel (%p252) target = $region44
        $region43: #{tpu_custom_call.1} parent=39 // pred_region
          %255 = dma.done %s248, 128
        $region44: #{tpu_custom_call.1} parent=39 // pred_fallthru
          _
        // Predicated region
        $region45: #{tpu_custom_call.1} parent=39 // pred_check
          %p256 = pneg %p66
        $region46: #{tpu_custom_call.1} parent=39 // pred_check_branch
          %258 = sbr.rel (%p256) target = $region48
        $region47: #{tpu_custom_call.1} parent=39 // pred_region
          %259 = dma.done [#allocation7], 256
        $region48: #{tpu_custom_call.1} parent=39 // pred_fallthru
          _
        // Predicated region
        $region49: #{tpu_custom_call.1} parent=39 // pred_check
          %p260 = pneg %p87
        $region50: #{tpu_custom_call.1} parent=39 // pred_check_branch
          %262 = sbr.rel (%p260) target = $region52
        $region51: #{tpu_custom_call.1} parent=39 // pred_region
          %263 = dma.done [#allocation7], 256
        $region52: #{tpu_custom_call.1} parent=39 // pred_fallthru
          _
        // Predicated region
        $region53: #{tpu_custom_call.1} parent=39 // pred_check
          %p264 = pneg %p108
        $region54: #{tpu_custom_call.1} parent=39 // pred_check_branch
          %266 = sbr.rel (%p264) target = $region56
        $region55: #{tpu_custom_call.1} parent=39 // pred_region
          %267 = dma.done [#allocation10], 128
        $region56: #{tpu_custom_call.1} parent=39 // pred_fallthru
          _
        // Predicated region
        $region57: #{tpu_custom_call.1} parent=39 // pred_check
          %p268 = pneg %p129
        $region58: #{tpu_custom_call.1} parent=39 // pred_check_branch
          %270 = sbr.rel (%p268) target = $region60
        $region59: #{tpu_custom_call.1} parent=39 // pred_region
          %271 = dma.done [#allocation10], 128
        $region60: #{tpu_custom_call.1} parent=39 // pred_fallthru
          _
        %s272 = sand.u32 %s32, 1
        %s273 = scalar_lea.sflag [#allocation4], %s272
        %s274 = sand.u32 %s32, 1
        %s275 = smul.addr %s274, 8
        %s276 = scalar_lea.vmem [#allocation3], %s275
        %p277 = pneg %p45
        %p278 = pneg %p42
        %p279 = pneg %p66
        %p280 = pneg %p63
        %p281 = pneg %p87
        %p282 = pneg %p84
        %p283 = pneg %p108
        %p284 = pneg %p105
        %p285 = pneg %p129
        %p286 = pneg %p126
        %p287 = pneg %p155
        %p288 = pneg %p152
        %s289 = sand.u32 %s142, 1
        %s290 = scalar_lea.sflag [#allocation5], %s289
        %s291 = sand.u32 %s142, 1
        %s292 = smul.addr %s291, 8
        %s293 = scalar_lea.vmem [#allocation12], %s292
        %v295 = vld [vmem:[%s251] sm:$0xff]
        %v296 = vpack.c.bf16 %v295, %v295
        %v297 = vld [vmem:[#allocation6] sm:$0xf]
        %v298 = vld [vmem:[#allocation6 + $0x4] sm:$0xf]
        %v299 = vld [vmem:[#allocation6 + $0x8] sm:$0xf]
        %v300 = vld [vmem:[#allocation6 + $0xc] sm:$0xf]
        %v305 = vunpack.c.l.b16 %v297
        %v306 = vunpack.c.l.b16 %v298
        %v307 = vunpack.c.l.b16 %v299
        %v308 = vunpack.c.l.b16 %v300
        %v309 = vpack.c.b16 %v306, %v305
        %v310 = vpack.c.b16 %v308, %v307
        %vm313 = vcmask 261120
        %v315 = vsel %vm313, %v296, 0
        %317 = vmatprep.subr.bf16.mxu0 0
        %318 = vmatpush1.bf16.msra.mxu0 0
        %319 = vmatprep.subr.bf16.mxu0 0
        %320 = vmatpush1.bf16.msra.mxu0 0
        %321 = vmatprep.subr.bf16.mxu0 0
        %322 = vmatpush1.bf16.msra.mxu0 0
        %323 = vmatprep.subr.bf16.mxu0 0
        %324 = vmatpush1.bf16.msra.mxu0 0
        %325 = vmatprep.subr.bf16.mxu0 0
        %326 = vmatpush1.bf16.msra.mxu0 0
        %327 = vmatprep.subr.bf16.mxu0 0
        %328 = vmatpush1.bf16.msra.mxu0 0
        %329 = vmatprep.subr.bf16.mxu0 0
        %330 = vmatpush1.bf16.msra.mxu0 %v310
        %331 = vmatprep.subr.bf16.mxu0 0
        %332 = vmatpush1.bf16.msra.mxu0 %v309
        %333 = vmatprep.subr.bf16.mxu0 0
        %334 = vmatpush2.bf16.msra.mxu0 0
        %335 = vmatprep.subr.bf16.mxu0 0
        %336 = vmatpush2.bf16.msra.mxu0 0
        %337 = vmatprep.subr.bf16.mxu0 0
        %338 = vmatpush2.bf16.msra.mxu0 0
        %339 = vmatprep.subr.bf16.mxu0 0
        %340 = vmatpush2.bf16.msra.mxu0 0
        %341 = vmatprep.subr.bf16.mxu0 0
        %342 = vmatpush2.bf16.msra.mxu0 0
        %343 = vmatprep.subr.bf16.mxu0 0
        %344 = vmatpush2.bf16.msra.mxu0 0
        %345 = vmatprep.subr.bf16.mxu0 0
        %346 = vmatpush2.bf16.msra.mxu0 0
        %347 = vmatprep.subr.bf16.mxu0 0
        %348 = vmatpush2.bf16.msra.mxu0 0
        %349 = vmatprep.mubr.bf16.mxu0 0
        %350 = vmatmul.mubr.bf16.gmra.mxu0 %v315
        %v351 = vpop.f32.mrf.mxu0
        %v352 = vadd.f32 0.0, %v351
        %v353 = vpop.f32.mrf.mxu0
        %v354 = vpop.f32.mrf.mxu0
        %v355 = vpop.f32.mrf.mxu0
        %356 = vdwg.mxu0
        %v357 = vld [vmem:[#allocation9] sm:$0xff]
        %v358 = vld [vmem:[#allocation11] sm:$0xff]
        %v359 = vmul.f32 %v352, %v357
        %361 = vrot.lane.b32.xlu0 %v358, 64
        %v362 = vpop.permute.xlu0 %361
        %v364 = vmul.f32 %v352, %v362
        %366 = vrot.lane.b32.xlu0 %v364, 64
        %v367 = vpop.permute.xlu0 %366
        %v369 = vadd.f32 %v359, %v367
        %v370 = vmul.f32 %v369, 0.35355338
        %372 = vrot.lane.b32.xlu0 %v357, 32
        %v373 = vpop.permute.xlu0 %372
        %v375 = vmul.f32 %v352, %v373
        %376 = vrot.lane.b32.xlu0 %v358, 96
        %v377 = vpop.permute.xlu0 %376
        %v379 = vmul.f32 %v352, %v377
        %381 = vrot.lane.b32.xlu0 %v379, 64
        %v382 = vpop.permute.xlu0 %381
        %v384 = vadd.f32 %v375, %v382
        %v385 = vpack.c.bf16 %v370, %v370
        %v386 = vpack.c.bf16 %v384, %v384
        %v387 = vpack.c.bf16 %v352, %v352
        %v388 = vlaneseq
        %v389 = vshrl.u32 %v388, 7
        %v390 = vlaneseq
        %v391 = vand.u32 %v390, 127
        %vm392 = vcmp.le.s32.totalorder %v391, %v389
        %v393 = vsel %vm392, 0.0, -1e+09
        %395 = vrot.lane.b32.xlu0 %v386, 96
        %v396 = vpop.permute.xlu0 %395
        %vm397 = vcmask 64512
        %v399 = vsel %vm397, %v385, 0
        %v402 = vsel %vm397, %v396, 0
        %404 = vmatprep.subr.bf16.mxu0 0
        %405 = vmatpush1.bf16.xpose.msra.mxu0 0
        %406 = vmatprep.subr.bf16.mxu0 0
        %407 = vmatpush1.bf16.xpose.msra.mxu0 0
        %408 = vmatprep.subr.bf16.mxu0 0
        %409 = vmatpush1.bf16.xpose.msra.mxu0 0
        %410 = vmatprep.subr.bf16.mxu0 0
        %411 = vmatpush1.bf16.xpose.msra.mxu0 0
        %412 = vmatprep.subr.bf16.mxu0 0
        %413 = vmatpush1.bf16.xpose.msra.mxu0 0
        %414 = vmatprep.subr.bf16.mxu0 0
        %415 = vmatpush1.bf16.xpose.msra.mxu0 0
        %416 = vmatprep.subr.bf16.mxu0 0
        %417 = vmatpush1.bf16.xpose.msra.mxu0 0
        %418 = vmatprep.subr.bf16.mxu0 0
        %419 = vmatpush1.bf16.xpose.msra.mxu0 %v402
        %420 = vmatprep.subr.bf16.mxu0 0
        %421 = vmatpush2.bf16.xpose.msra.mxu0 0
        %422 = vmatprep.subr.bf16.mxu0 0
        %423 = vmatpush2.bf16.xpose.msra.mxu0 0
        %424 = vmatprep.subr.bf16.mxu0 0
        %425 = vmatpush2.bf16.xpose.msra.mxu0 0
        %426 = vmatprep.subr.bf16.mxu0 0
        %427 = vmatpush2.bf16.xpose.msra.mxu0 0
        %428 = vmatprep.subr.bf16.mxu0 0
        %429 = vmatpush2.bf16.xpose.msra.mxu0 0
        %430 = vmatprep.subr.bf16.mxu0 0
        %431 = vmatpush2.bf16.xpose.msra.mxu0 0
        %432 = vmatprep.subr.bf16.mxu0 0
        %433 = vmatpush2.bf16.xpose.msra.mxu0 0
        %434 = vmatprep.subr.bf16.mxu0 0
        %435 = vmatpush2.bf16.xpose.msra.mxu0 0
        %436 = vmatprep.mubr.bf16.mxu0 0
        %437 = vmatmul.mubr.bf16.gmra.mxu0 %v399
        %v438 = vpop.f32.mrf.mxu0
        %v439 = vadd.f32 %v393, %v438
        %v440 = vpop.f32.mrf.mxu0
        %v441 = vpop.f32.mrf.mxu0
        %v442 = vpop.f32.mrf.mxu0
        %443 = vdwg.mxu0
        %v444 = vsel %vm397, %v439, -inf
        %445 = vmax.xlane.f32.xlu0 %v444
        %v446 = vpop.xlane.xlu0 %445
        %v447 = vsub.f32 %v439, %v446
        %v448 = vmul.f32 %v447, 1.442695
        %v449 = vpow.pop %v448
        %v450 = vsel %vm397, %v449, 0.0
        %451 = vadd.xlane.f32.xlu0 %v450
        %v452 = vpop.xlane.xlu0 %451
        %v453 = vrcp.pop %v452
        %v454 = vmul.f32 %v449, %v453
        %v455 = vpack.c.bf16 %v454, %v454
        %457 = vrot.lane.b32.xlu0 %v387, 80
        %v458 = vpop.permute.xlu0 %457
        %v460 = vsel %vm397, %v455, 0
        %vm462 = vcmask 1043456
        %v464 = vsel %vm462, %v458, 0
        %466 = vmatprep.subr.bf16.mxu0 0
        %467 = vmatpush1.bf16.msra.mxu0 0
        %468 = vmatprep.subr.bf16.mxu0 0
        %469 = vmatpush1.bf16.msra.mxu0 0
        %470 = vmatprep.subr.bf16.mxu0 0
        %471 = vmatpush1.bf16.msra.mxu0 0
        %472 = vmatprep.subr.bf16.mxu0 0
        %473 = vmatpush1.bf16.msra.mxu0 0
        %474 = vmatprep.subr.bf16.mxu0 0
        %475 = vmatpush1.bf16.msra.mxu0 0
        %476 = vmatprep.subr.bf16.mxu0 0
        %477 = vmatpush1.bf16.msra.mxu0 0
        %478 = vmatprep.subr.bf16.mxu0 0
        %479 = vmatpush1.bf16.msra.mxu0 0
        %480 = vmatprep.subr.bf16.mxu0 0
        %481 = vmatpush1.bf16.msra.mxu0 %v464
        %482 = vmatprep.subr.bf16.mxu0 0
        %483 = vmatpush2.bf16.msra.mxu0 0
        %484 = vmatprep.subr.bf16.mxu0 0
        %485 = vmatpush2.bf16.msra.mxu0 0
        %486 = vmatprep.subr.bf16.mxu0 0
        %487 = vmatpush2.bf16.msra.mxu0 0
        %488 = vmatprep.subr.bf16.mxu0 0
        %489 = vmatpush2.bf16.msra.mxu0 0
        %490 = vmatprep.subr.bf16.mxu0 0
        %491 = vmatpush2.bf16.msra.mxu0 0
        %492 = vmatprep.subr.bf16.mxu0 0
        %493 = vmatpush2.bf16.msra.mxu0 0
        %494 = vmatprep.subr.bf16.mxu0 0
        %495 = vmatpush2.bf16.msra.mxu0 0
        %496 = vmatprep.subr.bf16.mxu0 0
        %497 = vmatpush2.bf16.msra.mxu0 0
        %498 = vmatprep.mubr.bf16.mxu0 0
        %499 = vmatmul.mubr.bf16.gmra.mxu0 %v460
        %v500 = vpop.f32.mrf.mxu0
        %v501 = vadd.f32 0.0, %v500
        %v502 = vpop.f32.mrf.mxu0
        %v503 = vpop.f32.mrf.mxu0
        %v504 = vpop.f32.mrf.mxu0
        %505 = vdwg.mxu0
        %506 = vst.msk [vmem:[#allocation2] sm:$0xff] %vm397, %v501
        %508 = vrot.lane.b32.xlu0 %v385, 120
        %v509 = vpop.permute.xlu0 %508
        %v511 = vsel %vm397, %v509, 0
        %513 = vmatprep.subr.bf16.mxu0 0
        %514 = vmatpush1.bf16.xpose.msra.mxu0 0
        %515 = vmatprep.subr.bf16.mxu0 0
        %516 = vmatpush1.bf16.xpose.msra.mxu0 0
        %517 = vmatprep.subr.bf16.mxu0 0
        %518 = vmatpush1.bf16.xpose.msra.mxu0 0
        %519 = vmatprep.subr.bf16.mxu0 0
        %520 = vmatpush1.bf16.xpose.msra.mxu0 0
        %521 = vmatprep.subr.bf16.mxu0 0
        %522 = vmatpush1.bf16.xpose.msra.mxu0 0
        %523 = vmatprep.subr.bf16.mxu0 0
        %524 = vmatpush1.bf16.xpose.msra.mxu0 0
        %525 = vmatprep.subr.bf16.mxu0 0
        %526 = vmatpush1.bf16.xpose.msra.mxu0 0
        %527 = vmatprep.subr.bf16.mxu0 0
        %528 = vmatpush1.bf16.xpose.msra.mxu0 %v402
        %529 = vmatprep.subr.bf16.mxu0 0
        %530 = vmatpush2.bf16.xpose.msra.mxu0 0
        %531 = vmatprep.subr.bf16.mxu0 0
        %532 = vmatpush2.bf16.xpose.msra.mxu0 0
        %533 = vmatprep.subr.bf16.mxu0 0
        %534 = vmatpush2.bf16.xpose.msra.mxu0 0
        %535 = vmatprep.subr.bf16.mxu0 0
        %536 = vmatpush2.bf16.xpose.msra.mxu0 0
        %537 = vmatprep.subr.bf16.mxu0 0
        %538 = vmatpush2.bf16.xpose.msra.mxu0 0
        %539 = vmatprep.subr.bf16.mxu0 0
        %540 = vmatpush2.bf16.xpose.msra.mxu0 0
        %541 = vmatprep.subr.bf16.mxu0 0
        %542 = vmatpush2.bf16.xpose.msra.mxu0 0
        %543 = vmatprep.subr.bf16.mxu0 0
        %544 = vmatpush2.bf16.xpose.msra.mxu0 0
        %545 = vmatprep.mubr.bf16.mxu0 0
        %546 = vmatmul.mubr.bf16.gmra.mxu0 %v511
        %v547 = vpop.f32.mrf.mxu0
        %v548 = vadd.f32 %v393, %v547
        %v549 = vpop.f32.mrf.mxu0
        %v550 = vpop.f32.mrf.mxu0
        %v551 = vpop.f32.mrf.mxu0
        %552 = vdwg.mxu0
        %v553 = vsel %vm397, %v548, -inf
        %554 = vmax.xlane.f32.xlu0 %v553
        %v555 = vpop.xlane.xlu0 %554
        %v556 = vsub.f32 %v548, %v555
        %v557 = vmul.f32 %v556, 1.442695
        %v558 = vpow.pop %v557
        %v559 = vsel %vm397, %v558, 0.0
        %560 = vadd.xlane.f32.xlu0 %v559
        %v561 = vpop.xlane.xlu0 %560
        %v562 = vrcp.pop %v561
        %v563 = vmul.f32 %v558, %v562
        %v564 = vpack.c.bf16 %v563, %v563
        %v566 = vsel %vm397, %v564, 0
        %568 = vmatprep.subr.bf16.mxu0 0
        %569 = vmatpush1.bf16.msra.mxu0 0
        %570 = vmatprep.subr.bf16.mxu0 0
        %571 = vmatpush1.bf16.msra.mxu0 0
        %572 = vmatprep.subr.bf16.mxu0 0
        %573 = vmatpush1.bf16.msra.mxu0 0
        %574 = vmatprep.subr.bf16.mxu0 0
        %575 = vmatpush1.bf16.msra.mxu0 0
        %576 = vmatprep.subr.bf16.mxu0 0
        %577 = vmatpush1.bf16.msra.mxu0 0
        %578 = vmatprep.subr.bf16.mxu0 0
        %579 = vmatpush1.bf16.msra.mxu0 0
        %580 = vmatprep.subr.bf16.mxu0 0
        %581 = vmatpush1.bf16.msra.mxu0 0
        %582 = vmatprep.subr.bf16.mxu0 0
        %583 = vmatpush1.bf16.msra.mxu0 %v464
        %584 = vmatprep.subr.bf16.mxu0 0
        %585 = vmatpush2.bf16.msra.mxu0 0
        %586 = vmatprep.subr.bf16.mxu0 0
        %587 = vmatpush2.bf16.msra.mxu0 0
        %588 = vmatprep.subr.bf16.mxu0 0
        %589 = vmatpush2.bf16.msra.mxu0 0
        %590 = vmatprep.subr.bf16.mxu0 0
        %591 = vmatpush2.bf16.msra.mxu0 0
        %592 = vmatprep.subr.bf16.mxu0 0
        %593 = vmatpush2.bf16.msra.mxu0 0
        %594 = vmatprep.subr.bf16.mxu0 0
        %595 = vmatpush2.bf16.msra.mxu0 0
        %596 = vmatprep.subr.bf16.mxu0 0
        %597 = vmatpush2.bf16.msra.mxu0 0
        %598 = vmatprep.subr.bf16.mxu0 0
        %599 = vmatpush2.bf16.msra.mxu0 0
        %600 = vmatprep.mubr.bf16.mxu0 0
        %601 = vmatmul.mubr.bf16.gmra.mxu0 %v566
        %v602 = vpop.f32.mrf.mxu0
        %v603 = vadd.f32 0.0, %v602
        %v604 = vpop.f32.mrf.mxu0
        %v605 = vpop.f32.mrf.mxu0
        %v606 = vpop.f32.mrf.mxu0
        %607 = vdwg.mxu0
        %609 = vrot.lane.b32.xlu0 %v603, 8
        %v610 = vpop.permute.xlu0 %609
        %vm612 = vcmask 130112
        %613 = vst.msk [vmem:[#allocation2] sm:$0xff] %vm612, %v610
        %614 = vrot.lane.b32.xlu0 %v385, 112
        %v615 = vpop.permute.xlu0 %614
        %616 = vrot.lane.b32.xlu0 %v386, 88
        %v617 = vpop.permute.xlu0 %616
        %v619 = vsel %vm397, %v615, 0
        %v622 = vsel %vm397, %v617, 0
        %624 = vmatprep.subr.bf16.mxu0 0
        %625 = vmatpush1.bf16.xpose.msra.mxu0 0
        %626 = vmatprep.subr.bf16.mxu0 0
        %627 = vmatpush1.bf16.xpose.msra.mxu0 0
        %628 = vmatprep.subr.bf16.mxu0 0
        %629 = vmatpush1.bf16.xpose.msra.mxu0 0
        %630 = vmatprep.subr.bf16.mxu0 0
        %631 = vmatpush1.bf16.xpose.msra.mxu0 0
        %632 = vmatprep.subr.bf16.mxu0 0
        %633 = vmatpush1.bf16.xpose.msra.mxu0 0
        %634 = vmatprep.subr.bf16.mxu0 0
        %635 = vmatpush1.bf16.xpose.msra.mxu0 0
        %636 = vmatprep.subr.bf16.mxu0 0
        %637 = vmatpush1.bf16.xpose.msra.mxu0 0
        %638 = vmatprep.subr.bf16.mxu0 0
        %639 = vmatpush1.bf16.xpose.msra.mxu0 %v622
        %640 = vmatprep.subr.bf16.mxu0 0
        %641 = vmatpush2.bf16.xpose.msra.mxu0 0
        %642 = vmatprep.subr.bf16.mxu0 0
        %643 = vmatpush2.bf16.xpose.msra.mxu0 0
        %644 = vmatprep.subr.bf16.mxu0 0
        %645 = vmatpush2.bf16.xpose.msra.mxu0 0
        %646 = vmatprep.subr.bf16.mxu0 0
        %647 = vmatpush2.bf16.xpose.msra.mxu0 0
        %648 = vmatprep.subr.bf16.mxu0 0
        %649 = vmatpush2.bf16.xpose.msra.mxu0 0
        %650 = vmatprep.subr.bf16.mxu0 0
        %651 = vmatpush2.bf16.xpose.msra.mxu0 0
        %652 = vmatprep.subr.bf16.mxu0 0
        %653 = vmatpush2.bf16.xpose.msra.mxu0 0
        %654 = vmatprep.subr.bf16.mxu0 0
        %655 = vmatpush2.bf16.xpose.msra.mxu0 0
        %656 = vmatprep.mubr.bf16.mxu0 0
        %657 = vmatmul.mubr.bf16.gmra.mxu0 %v619
        %v658 = vpop.f32.mrf.mxu0
        %v659 = vadd.f32 %v393, %v658
        %v660 = vpop.f32.mrf.mxu0
        %v661 = vpop.f32.mrf.mxu0
        %v662 = vpop.f32.mrf.mxu0
        %663 = vdwg.mxu0
        %v664 = vsel %vm397, %v659, -inf
        %665 = vmax.xlane.f32.xlu0 %v664
        %v666 = vpop.xlane.xlu0 %665
        %v667 = vsub.f32 %v659, %v666
        %v668 = vmul.f32 %v667, 1.442695
        %v669 = vpow.pop %v668
        %v670 = vsel %vm397, %v669, 0.0
        %671 = vadd.xlane.f32.xlu0 %v670
        %v672 = vpop.xlane.xlu0 %671
        %v673 = vrcp.pop %v672
        %v674 = vmul.f32 %v669, %v673
        %v675 = vpack.c.bf16 %v674, %v674
        %676 = vrot.lane.b32.xlu0 %v387, 72
        %v677 = vpop.permute.xlu0 %676
        %v679 = vsel %vm397, %v675, 0
        %v682 = vsel %vm462, %v677, 0
        %684 = vmatprep.subr.bf16.mxu0 0
        %685 = vmatpush1.bf16.msra.mxu0 0
        %686 = vmatprep.subr.bf16.mxu0 0
        %687 = vmatpush1.bf16.msra.mxu0 0
        %688 = vmatprep.subr.bf16.mxu0 0
        %689 = vmatpush1.bf16.msra.mxu0 0
        %690 = vmatprep.subr.bf16.mxu0 0
        %691 = vmatpush1.bf16.msra.mxu0 0
        %692 = vmatprep.subr.bf16.mxu0 0
        %693 = vmatpush1.bf16.msra.mxu0 0
        %694 = vmatprep.subr.bf16.mxu0 0
        %695 = vmatpush1.bf16.msra.mxu0 0
        %696 = vmatprep.subr.bf16.mxu0 0
        %697 = vmatpush1.bf16.msra.mxu0 0
        %698 = vmatprep.subr.bf16.mxu0 0
        %699 = vmatpush1.bf16.msra.mxu0 %v682
        %700 = vmatprep.subr.bf16.mxu0 0
        %701 = vmatpush2.bf16.msra.mxu0 0
        %702 = vmatprep.subr.bf16.mxu0 0
        %703 = vmatpush2.bf16.msra.mxu0 0
        %704 = vmatprep.subr.bf16.mxu0 0
        %705 = vmatpush2.bf16.msra.mxu0 0
        %706 = vmatprep.subr.bf16.mxu0 0
        %707 = vmatpush2.bf16.msra.mxu0 0
        %708 = vmatprep.subr.bf16.mxu0 0
        %709 = vmatpush2.bf16.msra.mxu0 0
        %710 = vmatprep.subr.bf16.mxu0 0
        %711 = vmatpush2.bf16.msra.mxu0 0
        %712 = vmatprep.subr.bf16.mxu0 0
        %713 = vmatpush2.bf16.msra.mxu0 0
        %714 = vmatprep.subr.bf16.mxu0 0
        %715 = vmatpush2.bf16.msra.mxu0 0
        %716 = vmatprep.mubr.bf16.mxu0 0
        %717 = vmatmul.mubr.bf16.gmra.mxu0 %v679
        %v718 = vpop.f32.mrf.mxu0
        %v719 = vadd.f32 0.0, %v718
        %v720 = vpop.f32.mrf.mxu0
        %v721 = vpop.f32.mrf.mxu0
        %v722 = vpop.f32.mrf.mxu0
        %723 = vdwg.mxu0
        %725 = vrot.lane.b32.xlu0 %v719, 16
        %v726 = vpop.permute.xlu0 %725
        %vm728 = vcmask 195712
        %729 = vst.msk [vmem:[#allocation2] sm:$0xff] %vm728, %v726
        %730 = vrot.lane.b32.xlu0 %v385, 104
        %v731 = vpop.permute.xlu0 %730
        %v733 = vsel %vm397, %v731, 0
        %735 = vmatprep.subr.bf16.mxu0 0
        %736 = vmatpush1.bf16.xpose.msra.mxu0 0
        %737 = vmatprep.subr.bf16.mxu0 0
        %738 = vmatpush1.bf16.xpose.msra.mxu0 0
        %739 = vmatprep.subr.bf16.mxu0 0
        %740 = vmatpush1.bf16.xpose.msra.mxu0 0
        %741 = vmatprep.subr.bf16.mxu0 0
        %742 = vmatpush1.bf16.xpose.msra.mxu0 0
        %743 = vmatprep.subr.bf16.mxu0 0
        %744 = vmatpush1.bf16.xpose.msra.mxu0 0
        %745 = vmatprep.subr.bf16.mxu0 0
        %746 = vmatpush1.bf16.xpose.msra.mxu0 0
        %747 = vmatprep.subr.bf16.mxu0 0
        %748 = vmatpush1.bf16.xpose.msra.mxu0 0
        %749 = vmatprep.subr.bf16.mxu0 0
        %750 = vmatpush1.bf16.xpose.msra.mxu0 %v622
        %751 = vmatprep.subr.bf16.mxu0 0
        %752 = vmatpush2.bf16.xpose.msra.mxu0 0
        %753 = vmatprep.subr.bf16.mxu0 0
        %754 = vmatpush2.bf16.xpose.msra.mxu0 0
        %755 = vmatprep.subr.bf16.mxu0 0
        %756 = vmatpush2.bf16.xpose.msra.mxu0 0
        %757 = vmatprep.subr.bf16.mxu0 0
        %758 = vmatpush2.bf16.xpose.msra.mxu0 0
        %759 = vmatprep.subr.bf16.mxu0 0
        %760 = vmatpush2.bf16.xpose.msra.mxu0 0
        %761 = vmatprep.subr.bf16.mxu0 0
        %762 = vmatpush2.bf16.xpose.msra.mxu0 0
        %763 = vmatprep.subr.bf16.mxu0 0
        %764 = vmatpush2.bf16.xpose.msra.mxu0 0
        %765 = vmatprep.subr.bf16.mxu0 0
        %766 = vmatpush2.bf16.xpose.msra.mxu0 0
        %767 = vmatprep.mubr.bf16.mxu0 0
        %768 = vmatmul.mubr.bf16.gmra.mxu0 %v733
        %v769 = vpop.f32.mrf.mxu0
        %v770 = vadd.f32 %v393, %v769
        %v771 = vpop.f32.mrf.mxu0
        %v772 = vpop.f32.mrf.mxu0
        %v773 = vpop.f32.mrf.mxu0
        %774 = vdwg.mxu0
        %v775 = vsel %vm397, %v770, -inf
        %776 = vmax.xlane.f32.xlu0 %v775
        %v777 = vpop.xlane.xlu0 %776
        %v778 = vsub.f32 %v770, %v777
        %v779 = vmul.f32 %v778, 1.442695
        %v780 = vpow.pop %v779
        %v781 = vsel %vm397, %v780, 0.0
        %782 = vadd.xlane.f32.xlu0 %v781
        %v783 = vpop.xlane.xlu0 %782
        %v784 = vrcp.pop %v783
        %v785 = vmul.f32 %v780, %v784
        %v786 = vpack.c.bf16 %v785, %v785
        %v788 = vsel %vm397, %v786, 0
        %790 = vmatprep.subr.bf16.mxu0 0
        %791 = vmatpush1.bf16.msra.mxu0 0
        %792 = vmatprep.subr.bf16.mxu0 0
        %793 = vmatpush1.bf16.msra.mxu0 0
        %794 = vmatprep.subr.bf16.mxu0 0
        %795 = vmatpush1.bf16.msra.mxu0 0
        %796 = vmatprep.subr.bf16.mxu0 0
        %797 = vmatpush1.bf16.msra.mxu0 0
        %798 = vmatprep.subr.bf16.mxu0 0
        %799 = vmatpush1.bf16.msra.mxu0 0
        %800 = vmatprep.subr.bf16.mxu0 0
        %801 = vmatpush1.bf16.msra.mxu0 0
        %802 = vmatprep.subr.bf16.mxu0 0
        %803 = vmatpush1.bf16.msra.mxu0 0
        %804 = vmatprep.subr.bf16.mxu0 0
        %805 = vmatpush1.bf16.msra.mxu0 %v682
        %806 = vmatprep.subr.bf16.mxu0 0
        %807 = vmatpush2.bf16.msra.mxu0 0
        %808 = vmatprep.subr.bf16.mxu0 0
        %809 = vmatpush2.bf16.msra.mxu0 0
        %810 = vmatprep.subr.bf16.mxu0 0
        %811 = vmatpush2.bf16.msra.mxu0 0
        %812 = vmatprep.subr.bf16.mxu0 0
        %813 = vmatpush2.bf16.msra.mxu0 0
        %814 = vmatprep.subr.bf16.mxu0 0
        %815 = vmatpush2.bf16.msra.mxu0 0
        %816 = vmatprep.subr.bf16.mxu0 0
        %817 = vmatpush2.bf16.msra.mxu0 0
        %818 = vmatprep.subr.bf16.mxu0 0
        %819 = vmatpush2.bf16.msra.mxu0 0
        %820 = vmatprep.subr.bf16.mxu0 0
        %821 = vmatpush2.bf16.msra.mxu0 0
        %822 = vmatprep.mubr.bf16.mxu0 0
        %823 = vmatmul.mubr.bf16.gmra.mxu0 %v788
        %v824 = vpop.f32.mrf.mxu0
        %v825 = vadd.f32 0.0, %v824
        %v826 = vpop.f32.mrf.mxu0
        %v827 = vpop.f32.mrf.mxu0
        %v828 = vpop.f32.mrf.mxu0
        %829 = vdwg.mxu0
        %831 = vrot.lane.b32.xlu0 %v825, 24
        %v832 = vpop.permute.xlu0 %831
        %vm834 = vcmask 261312
        %835 = vst.msk [vmem:[#allocation2] sm:$0xff] %vm834, %v832
        %v836 = vld [vmem:[#allocation2] sm:$0xff]
        %v837 = vpack.c.bf16 %v836, %v836
        %v838 = vld [vmem:[#allocation8] sm:$0xf]
        %v839 = vld [vmem:[#allocation8 + $0x4] sm:$0xf]
        %v840 = vld [vmem:[#allocation8 + $0x8] sm:$0xf]
        %v841 = vld [vmem:[#allocation8 + $0xc] sm:$0xf]
        %v846 = vunpack.c.l.b16 %v838
        %v847 = vunpack.c.l.b16 %v839
        %v848 = vunpack.c.l.b16 %v840
        %v849 = vunpack.c.l.b16 %v841
        %v850 = vpack.c.b16 %v847, %v846
        %v851 = vpack.c.b16 %v849, %v848
        %v855 = vsel %vm313, %v837, 0
        %857 = vmatprep.subr.bf16.mxu0 0
        %858 = vmatpush1.bf16.msra.mxu0 0
        %859 = vmatprep.subr.bf16.mxu0 0
        %860 = vmatpush1.bf16.msra.mxu0 0
        %861 = vmatprep.subr.bf16.mxu0 0
        %862 = vmatpush1.bf16.msra.mxu0 0
        %863 = vmatprep.subr.bf16.mxu0 0
        %864 = vmatpush1.bf16.msra.mxu0 0
        %865 = vmatprep.subr.bf16.mxu0 0
        %866 = vmatpush1.bf16.msra.mxu0 0
        %867 = vmatprep.subr.bf16.mxu0 0
        %868 = vmatpush1.bf16.msra.mxu0 0
        %869 = vmatprep.subr.bf16.mxu0 0
        %870 = vmatpush1.bf16.msra.mxu0 %v851
        %871 = vmatprep.subr.bf16.mxu0 0
        %872 = vmatpush1.bf16.msra.mxu0 %v850
        %873 = vmatprep.subr.bf16.mxu0 0
        %874 = vmatpush2.bf16.msra.mxu0 0
        %875 = vmatprep.subr.bf16.mxu0 0
        %876 = vmatpush2.bf16.msra.mxu0 0
        %877 = vmatprep.subr.bf16.mxu0 0
        %878 = vmatpush2.bf16.msra.mxu0 0
        %879 = vmatprep.subr.bf16.mxu0 0
        %880 = vmatpush2.bf16.msra.mxu0 0
        %881 = vmatprep.subr.bf16.mxu0 0
        %882 = vmatpush2.bf16.msra.mxu0 0
        %883 = vmatprep.subr.bf16.mxu0 0
        %884 = vmatpush2.bf16.msra.mxu0 0
        %885 = vmatprep.subr.bf16.mxu0 0
        %886 = vmatpush2.bf16.msra.mxu0 0
        %887 = vmatprep.subr.bf16.mxu0 0
        %888 = vmatpush2.bf16.msra.mxu0 0
        %889 = vmatprep.mubr.bf16.mxu0 0
        %890 = vmatmul.mubr.bf16.gmra.mxu0 %v855
        %v891 = vpop.f32.mrf.mxu0
        %v892 = vadd.f32 0.0, %v891
        %v893 = vpop.f32.mrf.mxu0
        %v894 = vpop.f32.mrf.mxu0
        %v895 = vpop.f32.mrf.mxu0
        %896 = vdwg.mxu0
        %897 = vst.msk [vmem:[%s293] sm:$0xff] %vm313, %v892
        %s898 = sand.u32 %s142, 1
        %s899 = scalar_lea.sflag [#allocation5], %s898
        %s900 = sand.u32 %s142, 1
        %s901 = smul.addr %s900, 8
        %s902 = scalar_lea.vmem [#allocation12], %s901
        // Predicated region
        $region61: #{tpu_custom_call.1} parent=39 // pred_check
          %p903 = pneg %p152
        $region62: #{tpu_custom_call.1} parent=39 // pred_check_branch
          %905 = sbr.rel (%p903) target = $region64
        $region63: #{tpu_custom_call.1} parent=39 // pred_region
          %s907 = ssub.s32 128, 128
          %908 = vsyncadd %s899, %s907
          %s909 = smul.addr %s24, 128
          %s910 = scalar_lea.hbm %s5, %s909
          %s912 = sshll.u32 %s902, 4
          %s913 = int_to_ptr.vmem [resolvable:$true] %s912
          %915 = dma.vmem_to_hbm [thread:$0]  %s913, 128, %s910, %s899
        $region64: #{tpu_custom_call.1} parent=39 // pred_fallthru
          _
      $region40: #{tpu_custom_call.1} parent=5 // pred_fallthru
        _
      %p916 = scmp.le.s32.totalorder 2, %s19
      // Predicated region
      $region65: #{tpu_custom_call.1} parent=5 // pred_check
        %p917 = pneg %p916
      $region66: #{tpu_custom_call.1} parent=5 // pred_check_branch
        %919 = sbr.rel (%p917) target = $region68
      $region67: #{tpu_custom_call.1} parent=5 // pred_region
        %s920 = ssub.s32 %s19, 2
        // Predicated region
        $region69: #{tpu_custom_call.1} parent=67 // pred_check
          %p921 = pneg %p158
        $region70: #{tpu_custom_call.1} parent=67 // pred_check_branch
          %923 = sbr.rel (%p921) target = $region72
        $region71: #{tpu_custom_call.1} parent=67 // pred_region
          %s924 = sand.u32 %s143, 1
          %s925 = scalar_lea.sflag [#allocation5], %s924
          %s926 = sand.u32 %s143, 1
          %s927 = smul.addr %s926, 8
          %s928 = scalar_lea.vmem [#allocation12], %s927
          %929 = dma.done %s925, 128
        $region72: #{tpu_custom_call.1} parent=67 // pred_fallthru
          _
      $region68: #{tpu_custom_call.1} parent=5 // pred_fallthru
        _
    $region6: #{tpu_custom_call.1} parent=1 // loop_footer
      %s23 = sadd.s32 1, %s19
    $region7: #{tpu_custom_call.1} parent=1 // loop_footer_branch
      %18 = sbr.rel target = $region3
    $region8: #{tpu_custom_call.1} parent=1 // loop_exit
      _
    %930 = vsyncpa [#allocation4], 1
    %s931 = scalar_lea.sflag [#allocation4], 1
    %932 = vsyncpa %s931, 1
    %933 = vsyncpa [#allocation7], 1
    %934 = vsyncpa [#allocation10], 1
    %935 = vsyncpa [#allocation5], 1
    %s936 = scalar_lea.sflag [#allocation5], 1
    %937 = vsyncpa %s936, 1

</llo_original>
